<compile_context>
chip_gen: v6e
topology: v6e:2x2x1
jax: 0.10.0
libtpu: 0.0.40
codegen_flags: <defaults>
</compile_context>

<pallas_src>
import functools
import math

import jax
import jax.numpy as jnp
from jax.experimental import pallas as pl
from jax.experimental.pallas import tpu as pltpu

LANE = 128


def _round_up(x, m):
    return (x + m - 1) // m * m


def _gcn_agg_kernel(a_ref, xw_ref, b_ref, o_ref, acc_ref, *,
                    tk, out_cols, mode, resident):
    """acc += A_hat[i,k] @ XW[k]; on the last k-step add bias and apply activation."""
    k = pl.program_id(1)

    @pl.when(k == 0)
    def _():
        acc_ref[...] = jnp.zeros_like(acc_ref)

    if resident:
        # XW is fully VMEM-resident; slice the k-th (tk, F) chunk.
        start = pl.multiple_of(k * tk, tk)
        xw = xw_ref[pl.ds(start, tk), :]
    else:
        xw = xw_ref[...]

    acc_ref[...] += jnp.dot(a_ref[...], xw, preferred_element_type=jnp.float32)

    @pl.when(k == pl.num_programs(1) - 1)
    def _():
        z = acc_ref[...] + b_ref[...]                       # f32, [tm, F_pad]
        if mode == "relu":
            # TODO(synk): F.dropout(training=True) would use pltpu.prng_seed +
            # pltpu.prng_random_bits here; eval path is identity.
            o_ref[...] = jnp.maximum(z, 0.0).astype(o_ref.dtype)
        else:  # masked log_softmax over the first `out_cols` (real) lanes
            col = jax.lax.broadcasted_iota(jnp.int32, z.shape, 1)
            valid = col < out_cols
            zm = jnp.where(valid, z, -jnp.inf)
            m = jnp.max(zm, axis=-1, keepdims=True)
            ez = jnp.where(valid, jnp.exp(zm - m), 0.0)
            lse = m + jnp.log(jnp.sum(ez, axis=-1, keepdims=True))
            o_ref[...] = jnp.where(valid, zm - lse, 0.0).astype(o_ref.dtype)


def _gcn_aggregate(a16, xw16, b32, *, out_cols, mode, out_dtype, tm, tk):
    """One GCNConv aggregation: activation(A_hat @ XW + b), tiled over (rows, src)."""
    n_p = a16.shape[0]
    fout = xw16.shape[1]

    # Keep XW fully resident in VMEM when small (DMA'd once); otherwise stream
    # (tk, fout) tiles along the reduction axis.
    resident_bytes = 2 * n_p * fout * 2          # double-buffered bf16
    resident = resident_bytes <= 8 * 1024 * 1024

    kernel = functools.partial(_gcn_agg_kernel, tk=tk, out_cols=out_cols,
                               mode=mode, resident=resident)

    xw_spec = (pl.BlockSpec((n_p, fout), lambda i, k: (0, 0)) if resident
               else pl.BlockSpec((tk, fout), lambda i, k: (k, 0)))

    out_itemsize = jnp.dtype(out_dtype).itemsize
    need = (2 * tm * tk * 2                       # A_hat tile, bf16, double-buffered
            + (resident_bytes if resident else 2 * tk * fout * 2)
            + 2 * fout * 4                        # bias
            + tm * fout * 4                       # f32 accumulator scratch
            + 2 * tm * fout * out_itemsize)       # output tile, double-buffered
    # Cap at 48 MiB so the same config is safe within v7x's 64 MiB/TC.
    vmem_limit = int(min(48 * 1024 * 1024, max(32 * 1024 * 1024, 2 * need)))

    return pl.pallas_call(
        kernel,
        out_shape=jax.ShapeDtypeStruct((n_p, fout), out_dtype),
        grid_spec=pltpu.PrefetchScalarGridSpec(
            num_scalar_prefetch=0,
            grid=(n_p // tm, n_p // tk),
            in_specs=[
                pl.BlockSpec((tm, tk), lambda i, k: (i, k)),   # A_hat tile (streamed over k)
                xw_spec,                                       # XW: resident or streamed
                pl.BlockSpec((1, fout), lambda i, k: (0, 0)),  # bias (resident)
            ],
            out_specs=pl.BlockSpec((tm, fout), lambda i, k: (i, 0)),
            scratch_shapes=[pltpu.VMEM((tm, fout), jnp.float32)],
        ),
        compiler_params=pltpu.CompilerParams(
            dimension_semantics=("parallel", "arbitrary"),
            vmem_limit_bytes=vmem_limit,
        ),
    )(a16, xw16, b32)


def gcn_forward(a_hat, x, w1, b1, w2, b2, *, tm=256, tk=256):
    """conv1 -> relu -> dropout(eval)=identity -> conv2 -> log_softmax."""
    n, _ = x.shape
    hidden = w1.shape[1]
    out_dim = w2.shape[1]

    n_p = _round_up(n, math.lcm(tm, tk))          # lcm, so asymmetric tiles never drop work
    hid_p = _round_up(hidden, LANE)
    out_p = _round_up(out_dim, LANE)

    # A_hat: cast to bf16 BEFORE padding (one fewer O(N^2) f32 temp).
    a16 = jnp.pad(a_hat.astype(jnp.bfloat16), ((0, n_p - n), (0, n_p - n)))
    x_pad = jnp.pad(x, ((0, n_p - n), (0, 0)))    # pad rows only; keep real K = input_dim

    # ---- Layer 1: feature transform hoisted out of the kernel (real K, no zero-K work).
    xw1 = jnp.dot(x_pad.astype(jnp.bfloat16), w1.astype(jnp.bfloat16),
                  preferred_element_type=jnp.float32)
    xw1 = jnp.pad(xw1, ((0, 0), (0, hid_p - hidden))).astype(jnp.bfloat16)
    b1_p = jnp.pad(b1, (0, hid_p - hidden)).astype(jnp.float32).reshape(1, hid_p)

    h16 = _gcn_aggregate(a16, xw1, b1_p, out_cols=hidden, mode="relu",
                         out_dtype=jnp.bfloat16, tm=tm, tk=tk)

    # ---- Layer 2 (dropout in eval mode is identity).
    hw2 = jnp.dot(h16[:, :hidden], w2.astype(jnp.bfloat16),
                  preferred_element_type=jnp.float32)
    hw2 = jnp.pad(hw2, ((0, 0), (0, out_p - out_dim))).astype(jnp.bfloat16)
    b2_p = jnp.pad(b2, (0, out_p - out_dim)).astype(jnp.float32).reshape(1, out_p)

    z = _gcn_aggregate(a16, hw2, b2_p, out_cols=out_dim, mode="log_softmax",
                       out_dtype=jnp.float32, tm=tm, tk=tk)
    return z[:n, :out_dim]


def normalized_adjacency(edge_index, num_nodes):
    """Dense A_hat = D^{-1/2}(A+I)D^{-1/2} (plain-JAX glue, matches GCNConv's gcn_norm)."""
    src, dst = edge_index[0], edge_index[1]
    a = jnp.zeros((num_nodes, num_nodes), jnp.float32)
    a = a.at[dst, src].add(1.0)                       # message flows src -> dst
    a = a + jnp.eye(num_nodes, dtype=jnp.float32)     # self loops
    deg = jnp.sum(a, axis=1)
    d_inv_sqrt = jnp.where(deg > 0, 1.0 / jnp.sqrt(deg), 0.0)
    return d_inv_sqrt[:, None] * a * d_inv_sqrt[None, :]


def reference_forward(a_hat, x, w1, b1, w2, b2):
    """Pure-JAX reference emulating the same bf16-input / f32-accumulation math."""
    a16 = a_hat.astype(jnp.bfloat16)
    xw = jnp.dot(x.astype(jnp.bfloat16), w1.astype(jnp.bfloat16),
                 preferred_element_type=jnp.float32)
    h = jnp.dot(a16, xw.astype(jnp.bfloat16), preferred_element_type=jnp.float32) + b1
    h = jnp.maximum(h, 0.0).astype(jnp.bfloat16)
    hw = jnp.dot(h, w2.astype(jnp.bfloat16), preferred_element_type=jnp.float32)
    z = jnp.dot(a16, hw.astype(jnp.bfloat16), preferred_element_type=jnp.float32) + b2
    return jax.nn.log_softmax(z, axis=1)


if __name__ == "__main__":
    # 512 nodes -> n_p = 512, grid (2, 2) with 256x256 tiles (>= 2 row tiles for
    # v7x megacore balance), input_dim=32, hidden=16, output_dim=8.
    num_nodes, input_dim, hidden_dim, output_dim = 512, 32, 16, 8

    key = jax.random.PRNGKey(0)
    k_x, k_w1, k_w2 = jax.random.split(key, 3)

    x = jax.random.normal(k_x, (num_nodes, input_dim), dtype=jnp.float32)

    # Bidirectional ring graph i <-> (i+1) mod N (no duplicate edges).
    idx = jnp.arange(num_nodes)
    fwd = jnp.stack([idx, (idx + 1) % num_nodes])
    edge_index = jnp.concatenate([fwd, fwd[::-1]], axis=1)          # [2, 2N]

    # Glorot-uniform weights, zero biases (mirrors pyg_nn.GCNConv default init).
    def glorot(k, shape):
        limit = jnp.sqrt(6.0 / (shape[0] + shape[1]))
        return jax.random.uniform(k, shape, jnp.float32, -limit, limit)

    w1 = glorot(k_w1, (input_dim, hidden_dim))
    b1 = jnp.zeros((hidden_dim,), jnp.float32)
    w2 = glorot(k_w2, (hidden_dim, output_dim))
    b2 = jnp.zeros((output_dim,), jnp.float32)

    a_hat = normalized_adjacency(edge_index, num_nodes)

    out = jax.block_until_ready(gcn_forward(a_hat, x, w1, b1, w2, b2))
    ref = jax.block_until_ready(reference_forward(a_hat, x, w1, b1, w2, b2))

    assert out.shape == (num_nodes, output_dim)
    assert jnp.allclose(out, ref, atol=1e-3, rtol=1e-3), "mismatch vs pure-JAX reference"
    print("KERNEL_OK")
</pallas_src>

<mosaic_0001>
module attributes {stable_mosaic.version = 11 : i64} {
  func.func @_gcn_agg_kernel(%arg0: i32, %arg1: i32, %arg2: memref<256x256xbf16, #tpu.memory_space<vmem>>, %arg3: memref<512x128xbf16, #tpu.memory_space<vmem>>, %arg4: memref<1x128xf32, #tpu.memory_space<vmem>>, %arg5: memref<256x128xbf16, #tpu.memory_space<vmem>>, %arg6: memref<256x128xf32, #tpu.memory_space<vmem>>) attributes {dimension_semantics = [#tpu.dimension_semantics<parallel>, #tpu.dimension_semantics<arbitrary>], iteration_bounds = array<i64: 2, 2>, scalar_prefetch = 0 : i64, scratch_operands = 1 : i64, tpu.core_type = #tpu.core_type<tc>, window_params = [{transform_indices = @transform_0, window_bounds = array<i64: 256, 256>}, {pipeline_mode = #tpu.pipeline_mode<synchronous>, transform_indices = @transform_1, window_bounds = array<i64: 512, 128>}, {pipeline_mode = #tpu.pipeline_mode<synchronous>, transform_indices = @transform_2, window_bounds = array<i64: 1, 128>}, {transform_indices = @transform_3, window_bounds = array<i64: 256, 128>}]} {
    %c0_i32 = arith.constant 0 : i32
    %0 = arith.cmpi eq, %arg1, %c0_i32 : i32
    %1 = arith.extui %0 : i1 to i32
    %c0_i32_0 = arith.constant 0 : i32
    %2 = arith.cmpi ne, %1, %c0_i32_0 : i32
    scf.if %2 {
      %cst_8 = arith.constant 0.000000e+00 : f32
      %15 = vector.broadcast %cst_8 : f32 to vector<256x128xf32>
      %c0_9 = arith.constant 0 : index
      %c0_10 = arith.constant 0 : index
      %16 = vector.load %arg6[%c0_9, %c0_10] : memref<256x128xf32, #tpu.memory_space<vmem>>, vector<256x128xf32>
      tpu.vector_store %arg6[%c0_9, %c0_10], %15 {strides = array<i32>} : memref<256x128xf32, #tpu.memory_space<vmem>>, vector<256x128xf32>,
    } else {
    }
    %c256_i32 = arith.constant 256 : i32
    %3 = arith.muli %arg1, %c256_i32 : i32
    %4 = tpu.assume_multiple %3, 256 : i32
    %5 = arith.index_cast %4 : i32 to index
    %c0 = arith.constant 0 : index
    %6 = vector.load %arg3[%5, %c0] : memref<512x128xbf16, #tpu.memory_space<vmem>>, vector<256x128xbf16>
    %c0_1 = arith.constant 0 : index
    %c0_2 = arith.constant 0 : index
    %7 = vector.load %arg6[%c0_1, %c0_2] : memref<256x128xf32, #tpu.memory_space<vmem>>, vector<256x128xf32>
    %c0_3 = arith.constant 0 : index
    %c0_4 = arith.constant 0 : index
    %8 = vector.load %arg2[%c0_3, %c0_4] : memref<256x256xbf16, #tpu.memory_space<vmem>>, vector<256x256xbf16>
    %cst = arith.constant dense<0.000000e+00> : vector<256x128xf32>
    %9 = tpu.matmul %8, %6, %cst {dimension_numbers = #tpu.dot_dimension_numbers<[1], [0], [0], [1], [0, 0, 1, 1], [], []>} : vector<256x256xbf16>, vector<256x128xbf16>, vector<256x128xf32> -> vector<256x128xf32>
    %10 = arith.addf %7, %9 : vector<256x128xf32>
    %c0_5 = arith.constant 0 : index
    %c0_6 = arith.constant 0 : index
    %11 = vector.load %arg6[%c0_5, %c0_6] : memref<256x128xf32, #tpu.memory_space<vmem>>, vector<256x128xf32>
    tpu.vector_store %arg6[%c0_5, %c0_6], %10 {strides = array<i32>} : memref<256x128xf32, #tpu.memory_space<vmem>>, vector<256x128xf32>,
    %c1_i32 = arith.constant 1 : i32
    %12 = arith.cmpi eq, %arg1, %c1_i32 : i32
    %13 = arith.extui %12 : i1 to i32
    %c0_i32_7 = arith.constant 0 : i32
    %14 = arith.cmpi ne, %13, %c0_i32_7 : i32
    scf.if %14 {
      %c0_8 = arith.constant 0 : index
      %c0_9 = arith.constant 0 : index
      %15 = vector.load %arg6[%c0_8, %c0_9] : memref<256x128xf32, #tpu.memory_space<vmem>>, vector<256x128xf32>
      %c0_10 = arith.constant 0 : index
      %c0_11 = arith.constant 0 : index
      %16 = vector.load %arg4[%c0_10, %c0_11] : memref<1x128xf32, #tpu.memory_space<vmem>>, vector<1x128xf32>
      %17 = vector.broadcast %16 : vector<1x128xf32> to vector<256x128xf32>
      %18 = arith.addf %15, %17 : vector<256x128xf32>
      %cst_12 = arith.constant 0.000000e+00 : f32
      %19 = vector.broadcast %cst_12 : f32 to vector<256x128xf32>
      %20 = arith.maximumf %18, %19 : vector<256x128xf32>
      %21 = arith.truncf %20 : vector<256x128xf32> to vector<256x128xbf16>
      %c0_13 = arith.constant 0 : index
      %c0_14 = arith.constant 0 : index
      %22 = vector.load %arg5[%c0_13, %c0_14] : memref<256x128xbf16, #tpu.memory_space<vmem>>, vector<256x128xbf16>
      tpu.vector_store %arg5[%c0_13, %c0_14], %21 {strides = array<i32>} : memref<256x128xbf16, #tpu.memory_space<vmem>>, vector<256x128xbf16>,
    } else {
    }
    return
  }
  func.func @transform_0(%arg0: i32, %arg1: i32) -> (i32, i32) {
    %c0_i32 = arith.constant 0 : i32
    return %arg0, %arg1 : i32, i32
  }
  func.func @transform_1(%arg0: i32, %arg1: i32) -> (i32, i32) {
    %c0_i32 = arith.constant 0 : i32
    %c0_i32_0 = arith.constant 0 : i32
    %c0_i32_1 = arith.constant 0 : i32
    return %c0_i32, %c0_i32_0 : i32, i32
  }
  func.func @transform_2(%arg0: i32, %arg1: i32) -> (i32, i32) {
    %c0_i32 = arith.constant 0 : i32
    %c0_i32_0 = arith.constant 0 : i32
    %c0_i32_1 = arith.constant 0 : i32
    return %c0_i32, %c0_i32_0 : i32, i32
  }
  func.func @transform_3(%arg0: i32, %arg1: i32) -> (i32, i32) {
    %c0_i32 = arith.constant 0 : i32
    %c0_i32_0 = arith.constant 0 : i32
    return %arg0, %c0_i32 : i32, i32
  }
}

</mosaic_0001>

<llo_original>
// kernel: tpu_custom_call.1
$region0: #{tpu_custom_call.1}
  #allocation0 [shape = 'u32[]', space=smem, size = 0x4, offset = 0x4, fixed_abs, tag = 'smem constant byte address 0x4 - core index']
  #allocation1 [shape = 'u32[144,128]{1,0:T(1,128)}', space=vmem, size = 0x12000, scoped, tag = 'internal scratch']
  #allocation2 [shape = 'f32[256,128]{1,0:T(8,128)}', space=vmem, size = 0x20000, scoped, tag = 'scratch operand']
  %s0 = inlined_call_operand.hbm [shape: bf16[512,512], index: 0, kind: input, shape index: {}]
  %s1 = inlined_call_operand.hbm [shape: bf16[512,128], index: 1, kind: input, shape index: {}]
  %s2 = inlined_call_operand.vmem [shape: f32[1,128], index: 2, kind: input, shape index: {}]
  %s3 = inlined_call_operand.hbm [shape: bf16[512,128], index: 3, kind: output, shape index: {}]
  %s4 = sld [smem:[#allocation0]]
  $region61: #{tpu_custom_call.1} parent=0
    _
  %s6 = ssub.s32 1, %s4
  %s7 = scalar_select 0, %s6, %s4
  $region1: #{tpu_custom_call.1} parent=0
    #allocation3 [shape = 'u8[262144]{0}', space=vmem, size = 0x40000, scoped, tag = 'input window, operand 0']
    #allocation4 [shape = 's32[2]{0}', space=sflag, size = 0x8, scoped, tag = 'scoped memory for tpu_custom_call.1']
    #allocation5 [shape = 's32[2]{0}', space=sflag, size = 0x8, scoped, tag = 'scoped memory for tpu_custom_call.1']
    #allocation6 [shape = 'u8[131072]{0}', space=vmem, size = 0x20000, scoped, tag = 'input window, operand 1, single buffered']
    #allocation7 [shape = 's32[1]{0}', space=sflag, size = 0x4, scoped, tag = 'scoped memory for tpu_custom_call.1']
    #allocation8 [shape = 'u8[131072]{0}', space=vmem, size = 0x20000, scoped, tag = 'output window, operand 0']
    %8 = vsyncpa [#allocation4], 0
    %s9 = scalar_lea.sflag [#allocation4], 1
    %10 = vsyncpa %s9, 0
    %11 = vsyncpa [#allocation7], 0
    %12 = vsyncpa [#allocation5], 0
    %s13 = scalar_lea.sflag [#allocation5], 1
    %14 = vsyncpa %s13, 0
    loop: start=0, step=1, limit=6
    $region2: #{tpu_custom_call.1} parent=1 // loop_pre_header
      _
    $region3: #{tpu_custom_call.1} parent=1 // loop_header
      %s16 = sphi 0, %s20
      %p17 = scmp.ge.s32.totalorder %s16, 6
      %s23 = sphi 0, %s35
      %s24 = sphi 0, %s31
      %s25 = sphi 0, %s23
      %s26 = sphi 0, %s24
      %s27 = sphi 0, %s25
      %s28 = sphi 0, %s26
      %s40 = sphi 0, %s42
      %s43 = sphi 0, %s40
      %s44 = sphi 0, %s43
      %s60 = sphi 0, %s44
      %s64 = sphi 0, %s64
      %s66 = sphi 0, %s64
      %s67 = sphi 0, %s66
      %s81 = sphi 0, %s67
      %s85 = sphi 0, %s85
      %s87 = sphi 0, %s85
      %s88 = sphi 0, %s87
      %s102 = sphi 0, %s88
      %s108 = sphi 0, %s110
      %s111 = sphi 0, %s108
      %s112 = sphi 0, %s111
      %s128 = sphi 0, %s112
    $region4: #{tpu_custom_call.1} parent=1 // loop_header_branch
      %19 = sbr.rel (%p17) target = $region8
    $region5: #{tpu_custom_call.1} parent=1 // loop_body
      %s21 = ssub.s32 %s16, 1
      %s22 = ssub.s32 %s16, 2
      %s29 = sadd.s32 1, %s24
      %p30 = scmp.ge.s32.totalorder %s29, 2
      %s31 = scalar_select %p30, 0, %s29
      %s32 = sadd.s32 1, %s23
      %s33 = scalar_select %p30, %s32, %s23
      %p34 = scmp.ge.s32.totalorder %s33, 2
      %s35 = scalar_select %p34, 0, %s33
      %s36 = ssub.s32 %s23, %s35
      %s37 = ssub.s32 %s24, %s31
      %s38 = sor.u32 %s36, %s37
      %p39 = scmp.eq.s32.totalorder %s38, 0
      %s41 = sadd.s32 %s40, 1
      %s42 = scalar_select %p39, %s40, %s41
      %p45 = pneg %p39
      %p46 = scmp.eq.s32.totalorder %s16, 3
      %p47 = por %p45, %p46
      %p48 = scmp.ne.s32.totalorder %s40, %s43
      %p49 = scmp.eq.s32.totalorder %s16, 0
      %p50 = por %p48, %p49
      %p51 = scmp.ne.s32.totalorder %s40, %s43
      %p52 = scmp.eq.s32.totalorder %s21, 3
      %p53 = por %p51, %p52
      %p54 = scmp.ne.s32.totalorder %s43, %s44
      %p55 = scmp.eq.s32.totalorder %s21, 0
      %p56 = por %p54, %p55
      %p57 = scmp.ne.s32.totalorder %s43, %s44
      %p58 = scmp.eq.s32.totalorder %s22, 3
      %p59 = por %p57, %p58
      %p61 = scmp.ne.s32.totalorder %s44, %s60
      %p62 = scmp.eq.s32.totalorder %s22, 0
      %p63 = por %p61, %p62
      %s65 = sadd.s32 %s64, 1
      %p68 = scmp.eq.s32.totalorder %s16, 3
      %p69 = scmp.ne.s32.totalorder %s64, %s66
      %p70 = scmp.eq.s32.totalorder %s16, 0
      %p71 = por %p69, %p70
      %p72 = scmp.ne.s32.totalorder %s64, %s66
      %p73 = scmp.eq.s32.totalorder %s21, 3
      %p74 = por %p72, %p73
      %p75 = scmp.ne.s32.totalorder %s66, %s67
      %p76 = scmp.eq.s32.totalorder %s21, 0
      %p77 = por %p75, %p76
      %p78 = scmp.ne.s32.totalorder %s66, %s67
      %p79 = scmp.eq.s32.totalorder %s22, 3
      %p80 = por %p78, %p79
      %p82 = scmp.ne.s32.totalorder %s67, %s81
      %p83 = scmp.eq.s32.totalorder %s22, 0
      %p84 = por %p82, %p83
      %s86 = sadd.s32 %s85, 1
      %p89 = scmp.eq.s32.totalorder %s16, 3
      %p90 = scmp.ne.s32.totalorder %s85, %s87
      %p91 = scmp.eq.s32.totalorder %s16, 0
      %p92 = por %p90, %p91
      %p93 = scmp.ne.s32.totalorder %s85, %s87
      %p94 = scmp.eq.s32.totalorder %s21, 3
      %p95 = por %p93, %p94
      %p96 = scmp.ne.s32.totalorder %s87, %s88
      %p97 = scmp.eq.s32.totalorder %s21, 0
      %p98 = por %p96, %p97
      %p99 = scmp.ne.s32.totalorder %s87, %s88
      %p100 = scmp.eq.s32.totalorder %s22, 3
      %p101 = por %p99, %p100
      %p103 = scmp.ne.s32.totalorder %s88, %s102
      %p104 = scmp.eq.s32.totalorder %s22, 0
      %p105 = por %p103, %p104
      %s106 = ssub.s32 %s23, %s35
      %p107 = scmp.eq.s32.totalorder %s106, 0
      %s109 = sadd.s32 %s108, 1
      %s110 = scalar_select %p107, %s108, %s109
      %p113 = pneg %p107
      %p114 = scmp.eq.s32.totalorder %s16, 3
      %p115 = por %p113, %p114
      %p116 = scmp.ne.s32.totalorder %s108, %s111
      %p117 = scmp.eq.s32.totalorder %s16, 0
      %p118 = por %p116, %p117
      %p119 = scmp.ne.s32.totalorder %s108, %s111
      %p120 = scmp.eq.s32.totalorder %s21, 3
      %p121 = por %p119, %p120
      %p122 = scmp.ne.s32.totalorder %s111, %s112
      %p123 = scmp.eq.s32.totalorder %s21, 0
      %p124 = por %p122, %p123
      %p125 = scmp.ne.s32.totalorder %s111, %s112
      %p126 = scmp.eq.s32.totalorder %s22, 3
      %p127 = por %p125, %p126
      %p129 = scmp.ne.s32.totalorder %s112, %s128
      %p130 = scmp.eq.s32.totalorder %s22, 0
      %p131 = por %p129, %p130
      %p132 = scmp.le.s32.totalorder 1, %s16
      %p133 = scmp.lt.s32.totalorder %s16, 5
      %p134 = pnand %p132, %p133
      %p135 = pneg %p134
      // Predicated region
      $region9: #{tpu_custom_call.1} parent=5 // pred_check
        _
      $region10: #{tpu_custom_call.1} parent=5 // pred_check_branch
        %137 = sbr.rel (%p134) target = $region12
      $region11: #{tpu_custom_call.1} parent=5 // pred_region
        %s138 = ssub.s32 %s16, 1
        // Predicated region
        $region13: #{tpu_custom_call.1} parent=11 // pred_check
          %p139 = pneg %p77
        $region14: #{tpu_custom_call.1} parent=11 // pred_check_branch
          %141 = sbr.rel (%p139) target = $region16
        $region15: #{tpu_custom_call.1} parent=11 // pred_region
          %s143 = ssub.s32 4096, 4096
          %144 = vsyncadd [#allocation7], %s143
          %s145 = sshll.u32 [#allocation6], 4
          %s146 = int_to_ptr.vmem [resolvable:$true] %s145
          %151 = dma.hbm_to_vmem [thread:$0]  %s1, 4096, %s146, [#allocation7], 64, 64, 4
        $region16: #{tpu_custom_call.1} parent=11 // pred_fallthru
          _
        // Predicated region
        $region17: #{tpu_custom_call.1} parent=11 // pred_check
          %p152 = pneg %p98
        $region18: #{tpu_custom_call.1} parent=11 // pred_check_branch
          %154 = sbr.rel (%p152) target = $region20
        $region19: #{tpu_custom_call.1} parent=11 // pred_region
          _
        $region20: #{tpu_custom_call.1} parent=11 // pred_fallthru
          _
      $region12: #{tpu_custom_call.1} parent=5 // pred_fallthru
        _
      %p155 = scmp.lt.s32.totalorder %s16, 4
      // Predicated region
      $region21: #{tpu_custom_call.1} parent=5 // pred_check
        %p156 = pneg %p155
      $region22: #{tpu_custom_call.1} parent=5 // pred_check_branch
        %158 = sbr.rel (%p156) target = $region24
      $region23: #{tpu_custom_call.1} parent=5 // pred_region
        // Predicated region
        $region25: #{tpu_custom_call.1} parent=23 // pred_check
          %p159 = pneg %p50
        $region26: #{tpu_custom_call.1} parent=23 // pred_check_branch
          %161 = sbr.rel (%p159) target = $region28
        $region27: #{tpu_custom_call.1} parent=23 // pred_region
          %s162 = sand.u32 %s40, 1
          %s163 = scalar_lea.sflag [#allocation4], %s162
          %s164 = sand.u32 %s40, 1
          %s165 = smul.addr %s164, 256
          %s166 = scalar_lea.vmem [#allocation3], %s165
          %s167 = smul.u32 32, %s23
          %s168 = smul.u32 2, %s24
          %s170 = ssub.s32 4096, 4096
          %171 = vsyncadd %s163, %s170
          %s172 = smul.addr %s167, 4
          %s173 = sadd.s32 %s168, %s172
          %s174 = smul.addr %s173, 64
          %s175 = scalar_lea.hbm %s0, %s174
          %s176 = sshll.u32 %s166, 4
          %s177 = int_to_ptr.vmem [resolvable:$true] %s176
          %182 = dma.hbm_to_vmem [thread:$0]  %s175, 4096, %s177, %s163, 256, 128, 8
        $region28: #{tpu_custom_call.1} parent=23 // pred_fallthru
          _
      $region24: #{tpu_custom_call.1} parent=5 // pred_fallthru
        _
      %p183 = scmp.le.s32.totalorder 1, %s16
      %p184 = scmp.lt.s32.totalorder %s16, 5
      %p185 = pnand %p183, %p184
      %p186 = pneg %p185
      // Predicated region
      $region29: #{tpu_custom_call.1} parent=5 // pred_check
        _
      $region30: #{tpu_custom_call.1} parent=5 // pred_check_branch
        %188 = sbr.rel (%p185) target = $region32
      $region31: #{tpu_custom_call.1} parent=5 // pred_region
        %s189 = ssub.s32 %s16, 1
        %s190 = sand.u32 %s43, 1
        %s191 = scalar_lea.sflag [#allocation4], %s190
        %s192 = sand.u32 %s43, 1
        %s193 = smul.addr %s192, 256
        %s194 = scalar_lea.vmem [#allocation3], %s193
        // Predicated region
        $region33: #{tpu_custom_call.1} parent=31 // pred_check
          %p195 = pneg %p56
        $region34: #{tpu_custom_call.1} parent=31 // pred_check_branch
          %197 = sbr.rel (%p195) target = $region36
        $region35: #{tpu_custom_call.1} parent=31 // pred_region
          %198 = dma.done %s191, 4096
        $region36: #{tpu_custom_call.1} parent=31 // pred_fallthru
          _
        // Predicated region
        $region37: #{tpu_custom_call.1} parent=31 // pred_check
          %p199 = pneg %p77
        $region38: #{tpu_custom_call.1} parent=31 // pred_check_branch
          %201 = sbr.rel (%p199) target = $region40
        $region39: #{tpu_custom_call.1} parent=31 // pred_region
          %202 = dma.done [#allocation7], 4096
        $region40: #{tpu_custom_call.1} parent=31 // pred_fallthru
          _
        %s203 = sand.u32 %s43, 1
        %s204 = scalar_lea.sflag [#allocation4], %s203
        %s205 = sand.u32 %s43, 1
        %s206 = smul.addr %s205, 256
        %s207 = scalar_lea.vmem [#allocation3], %s206
        %p208 = pneg %p56
        %p209 = pneg %p53
        %p210 = pneg %p77
        %p211 = pneg %p74
        %p212 = pneg %p98
        %p213 = pneg %p95
        %p214 = pneg %p124
        %p215 = pneg %p121
        %s216 = sand.u32 %s111, 1
        %s217 = scalar_lea.sflag [#allocation5], %s216
        %s218 = sand.u32 %s111, 1
        %s219 = smul.addr %s218, 128
        %s220 = scalar_lea.vmem [#allocation8], %s219
        %s221 = smul.u32 32, %s25
        %s222 = smul.u32 2, %s26
        %s223 = smul.u32 32, %s25
        %p225 = scmp.eq.s32.totalorder %s26, 0
        // Predicated region
        $region41: #{tpu_custom_call.1} parent=31 // pred_check
          %p226 = pneg %p225
        $region42: #{tpu_custom_call.1} parent=31 // pred_check_branch
          %228 = sbr.rel (%p226) target = $region44
        $region43: #{tpu_custom_call.1} parent=31 // pred_region
          %229 = vst [vmem:[#allocation2] sm:$0xff] 0.0
          %230 = vst [vmem:[#allocation2 + $0x8] sm:$0xff] 0.0
          %231 = vst [vmem:[#allocation2 + $0x10] sm:$0xff] 0.0
          %232 = vst [vmem:[#allocation2 + $0x18] sm:$0xff] 0.0
          %233 = vst [vmem:[#allocation2 + $0x20] sm:$0xff] 0.0
          %234 = vst [vmem:[#allocation2 + $0x28] sm:$0xff] 0.0
          %235 = vst [vmem:[#allocation2 + $0x30] sm:$0xff] 0.0
          %236 = vst [vmem:[#allocation2 + $0x38] sm:$0xff] 0.0
          %237 = vst [vmem:[#allocation2 + $0x40] sm:$0xff] 0.0
          %238 = vst [vmem:[#allocation2 + $0x48] sm:$0xff] 0.0
          %239 = vst [vmem:[#allocation2 + $0x50] sm:$0xff] 0.0
          %240 = vst [vmem:[#allocation2 + $0x58] sm:$0xff] 0.0
          %241 = vst [vmem:[#allocation2 + $0x60] sm:$0xff] 0.0
          %242 = vst [vmem:[#allocation2 + $0x68] sm:$0xff] 0.0
          %243 = vst [vmem:[#allocation2 + $0x70] sm:$0xff] 0.0
          %244 = vst [vmem:[#allocation2 + $0x78] sm:$0xff] 0.0
          %245 = vst [vmem:[#allocation2 + $0x80] sm:$0xff] 0.0
          %246 = vst [vmem:[#allocation2 + $0x88] sm:$0xff] 0.0
          %247 = vst [vmem:[#allocation2 + $0x90] sm:$0xff] 0.0
          %248 = vst [vmem:[#allocation2 + $0x98] sm:$0xff] 0.0
          %249 = vst [vmem:[#allocation2 + $0xa0] sm:$0xff] 0.0
          %250 = vst [vmem:[#allocation2 + $0xa8] sm:$0xff] 0.0
          %251 = vst [vmem:[#allocation2 + $0xb0] sm:$0xff] 0.0
          %252 = vst [vmem:[#allocation2 + $0xb8] sm:$0xff] 0.0
          %253 = vst [vmem:[#allocation2 + $0xc0] sm:$0xff] 0.0
          %254 = vst [vmem:[#allocation2 + $0xc8] sm:$0xff] 0.0
          %255 = vst [vmem:[#allocation2 + $0xd0] sm:$0xff] 0.0
          %256 = vst [vmem:[#allocation2 + $0xd8] sm:$0xff] 0.0
          %257 = vst [vmem:[#allocation2 + $0xe0] sm:$0xff] 0.0
          %258 = vst [vmem:[#allocation2 + $0xe8] sm:$0xff] 0.0
          %259 = vst [vmem:[#allocation2 + $0xf0] sm:$0xff] 0.0
          %260 = vst [vmem:[#allocation2 + $0xf8] sm:$0xff] 0.0
        $region44: #{tpu_custom_call.1} parent=31 // pred_fallthru
          _
        %s261 = smul.u32 %s26, 256
        %s262 = sshra.s32 %s261, 3
        %s263 = sand.u32 %s261, 7
        %s264 = smul.addr %s262, 4
        %s265 = scalar_lea.vmem [#allocation6], %s264
        %v266 = vld [vmem:[%s265] sm:$0xf]
        %v267 = vld [vmem:[%s265 + $0x4] sm:$0xf]
        %v268 = vld [vmem:[%s265 + $0x8] sm:$0xf]
        %v269 = vld [vmem:[%s265 + $0xc] sm:$0xf]
        %v270 = vld [vmem:[%s265 + $0x10] sm:$0xf]
        %v271 = vld [vmem:[%s265 + $0x14] sm:$0xf]
        %v272 = vld [vmem:[%s265 + $0x18] sm:$0xf]
        %v273 = vld [vmem:[%s265 + $0x1c] sm:$0xf]
        %v274 = vld [vmem:[%s265 + $0x20] sm:$0xf]
        %v275 = vld [vmem:[%s265 + $0x24] sm:$0xf]
        %v276 = vld [vmem:[%s265 + $0x28] sm:$0xf]
        %v277 = vld [vmem:[%s265 + $0x2c] sm:$0xf]
        %v278 = vld [vmem:[%s265 + $0x30] sm:$0xf]
        %v279 = vld [vmem:[%s265 + $0x34] sm:$0xf]
        %v280 = vld [vmem:[%s265 + $0x38] sm:$0xf]
        %v281 = vld [vmem:[%s265 + $0x3c] sm:$0xf]
        %v282 = vld [vmem:[%s265 + $0x40] sm:$0xf]
        %v283 = vld [vmem:[%s265 + $0x44] sm:$0xf]
        %v284 = vld [vmem:[%s265 + $0x48] sm:$0xf]
        %v285 = vld [vmem:[%s265 + $0x4c] sm:$0xf]
        %v286 = vld [vmem:[%s265 + $0x50] sm:$0xf]
        %v287 = vld [vmem:[%s265 + $0x54] sm:$0xf]
        %v288 = vld [vmem:[%s265 + $0x58] sm:$0xf]
        %v289 = vld [vmem:[%s265 + $0x5c] sm:$0xf]
        %v290 = vld [vmem:[%s265 + $0x60] sm:$0xf]
        %v291 = vld [vmem:[%s265 + $0x64] sm:$0xf]
        %v292 = vld [vmem:[%s265 + $0x68] sm:$0xf]
        %v293 = vld [vmem:[%s265 + $0x6c] sm:$0xf]
        %v294 = vld [vmem:[%s265 + $0x70] sm:$0xf]
        %v295 = vld [vmem:[%s265 + $0x74] sm:$0xf]
        %v296 = vld [vmem:[%s265 + $0x78] sm:$0xf]
        %v297 = vld [vmem:[%s265 + $0x7c] sm:$0xf]
        %v298 = vld [vmem:[#allocation2] sm:$0xff]
        %v299 = vld [vmem:[#allocation2 + $0x8] sm:$0xff]
        %v300 = vld [vmem:[#allocation2 + $0x10] sm:$0xff]
        %v301 = vld [vmem:[#allocation2 + $0x18] sm:$0xff]
        %v302 = vld [vmem:[#allocation2 + $0x20] sm:$0xff]
        %v303 = vld [vmem:[#allocation2 + $0x28] sm:$0xff]
        %v304 = vld [vmem:[#allocation2 + $0x30] sm:$0xff]
        %v305 = vld [vmem:[#allocation2 + $0x38] sm:$0xff]
        %v306 = vld [vmem:[#allocation2 + $0x40] sm:$0xff]
        %v307 = vld [vmem:[#allocation2 + $0x48] sm:$0xff]
        %v308 = vld [vmem:[#allocation2 + $0x50] sm:$0xff]
        %v309 = vld [vmem:[#allocation2 + $0x58] sm:$0xff]
        %v310 = vld [vmem:[#allocation2 + $0x60] sm:$0xff]
        %v311 = vld [vmem:[#allocation2 + $0x68] sm:$0xff]
        %v312 = vld [vmem:[#allocation2 + $0x70] sm:$0xff]
        %v313 = vld [vmem:[#allocation2 + $0x78] sm:$0xff]
        %v314 = vld [vmem:[#allocation2 + $0x80] sm:$0xff]
        %v315 = vld [vmem:[#allocation2 + $0x88] sm:$0xff]
        %v316 = vld [vmem:[#allocation2 + $0x90] sm:$0xff]
        %v317 = vld [vmem:[#allocation2 + $0x98] sm:$0xff]
        %v318 = vld [vmem:[#allocation2 + $0xa0] sm:$0xff]
        %v319 = vld [vmem:[#allocation2 + $0xa8] sm:$0xff]
        %v320 = vld [vmem:[#allocation2 + $0xb0] sm:$0xff]
        %v321 = vld [vmem:[#allocation2 + $0xb8] sm:$0xff]
        %v322 = vld [vmem:[#allocation2 + $0xc0] sm:$0xff]
        %v323 = vld [vmem:[#allocation2 + $0xc8] sm:$0xff]
        %v324 = vld [vmem:[#allocation2 + $0xd0] sm:$0xff]
        %v325 = vld [vmem:[#allocation2 + $0xd8] sm:$0xff]
        %v326 = vld [vmem:[#allocation2 + $0xe0] sm:$0xff]
        %v327 = vld [vmem:[#allocation2 + $0xe8] sm:$0xff]
        %v328 = vld [vmem:[#allocation2 + $0xf0] sm:$0xff]
        %v329 = vld [vmem:[#allocation2 + $0xf8] sm:$0xff]
        %v330 = vld [vmem:[%s194] sm:$0xff]
        %v331 = vld [vmem:[%s194 + $0x8] sm:$0xff]
        %v332 = vld [vmem:[%s194 + $0x10] sm:$0xff]
        %v333 = vld [vmem:[%s194 + $0x18] sm:$0xff]
        %v334 = vld [vmem:[%s194 + $0x20] sm:$0xff]
        %v335 = vld [vmem:[%s194 + $0x28] sm:$0xff]
        %v336 = vld [vmem:[%s194 + $0x30] sm:$0xff]
        %v337 = vld [vmem:[%s194 + $0x38] sm:$0xff]
        %v338 = vld [vmem:[%s194 + $0x40] sm:$0xff]
        %v339 = vld [vmem:[%s194 + $0x48] sm:$0xff]
        %v340 = vld [vmem:[%s194 + $0x50] sm:$0xff]
        %v341 = vld [vmem:[%s194 + $0x58] sm:$0xff]
        %v342 = vld [vmem:[%s194 + $0x60] sm:$0xff]
        %v343 = vld [vmem:[%s194 + $0x68] sm:$0xff]
        %v344 = vld [vmem:[%s194 + $0x70] sm:$0xff]
        %v345 = vld [vmem:[%s194 + $0x78] sm:$0xff]
        %v346 = vld [vmem:[%s194 + $0x80] sm:$0xff]
        %v347 = vld [vmem:[%s194 + $0x88] sm:$0xff]
        %v348 = vld [vmem:[%s194 + $0x90] sm:$0xff]
        %v349 = vld [vmem:[%s194 + $0x98] sm:$0xff]
        %v350 = vld [vmem:[%s194 + $0xa0] sm:$0xff]
        %v351 = vld [vmem:[%s194 + $0xa8] sm:$0xff]
        %v352 = vld [vmem:[%s194 + $0xb0] sm:$0xff]
        %v353 = vld [vmem:[%s194 + $0xb8] sm:$0xff]
        %v354 = vld [vmem:[%s194 + $0xc0] sm:$0xff]
        %v355 = vld [vmem:[%s194 + $0xc8] sm:$0xff]
        %v356 = vld [vmem:[%s194 + $0xd0] sm:$0xff]
        %v357 = vld [vmem:[%s194 + $0xd8] sm:$0xff]
        %v358 = vld [vmem:[%s194 + $0xe0] sm:$0xff]
        %v359 = vld [vmem:[%s194 + $0xe8] sm:$0xff]
        %v360 = vld [vmem:[%s194 + $0xf0] sm:$0xff]
        %v361 = vld [vmem:[%s194 + $0xf8] sm:$0xff]
        %v394 = vunpack.c.l.b16 %v330
        %v395 = vunpack.c.h.b16 %v330
        %v396 = vunpack.c.l.b16 %v331
        %v397 = vunpack.c.h.b16 %v331
        %v398 = vunpack.c.l.b16 %v332
        %v399 = vunpack.c.h.b16 %v332
        %v400 = vunpack.c.l.b16 %v333
        %v401 = vunpack.c.h.b16 %v333
        %v402 = vunpack.c.l.b16 %v334
        %v403 = vunpack.c.h.b16 %v334
        %v404 = vunpack.c.l.b16 %v335
        %v405 = vunpack.c.h.b16 %v335
        %v406 = vunpack.c.l.b16 %v336
        %v407 = vunpack.c.h.b16 %v336
        %v408 = vunpack.c.l.b16 %v337
        %v409 = vunpack.c.h.b16 %v337
        %v410 = vunpack.c.l.b16 %v338
        %v411 = vunpack.c.h.b16 %v338
        %v412 = vunpack.c.l.b16 %v339
        %v413 = vunpack.c.h.b16 %v339
        %v414 = vunpack.c.l.b16 %v340
        %v415 = vunpack.c.h.b16 %v340
        %v416 = vunpack.c.l.b16 %v341
        %v417 = vunpack.c.h.b16 %v341
        %v418 = vunpack.c.l.b16 %v342
        %v419 = vunpack.c.h.b16 %v342
        %v420 = vunpack.c.l.b16 %v343
        %v421 = vunpack.c.h.b16 %v343
        %v422 = vunpack.c.l.b16 %v344
        %v423 = vunpack.c.h.b16 %v344
        %v424 = vunpack.c.l.b16 %v345
        %v425 = vunpack.c.h.b16 %v345
        %v426 = vunpack.c.l.b16 %v346
        %v427 = vunpack.c.h.b16 %v346
        %v428 = vunpack.c.l.b16 %v347
        %v429 = vunpack.c.h.b16 %v347
        %v430 = vunpack.c.l.b16 %v348
        %v431 = vunpack.c.h.b16 %v348
        %v432 = vunpack.c.l.b16 %v349
        %v433 = vunpack.c.h.b16 %v349
        %v434 = vunpack.c.l.b16 %v350
        %v435 = vunpack.c.h.b16 %v350
        %v436 = vunpack.c.l.b16 %v351
        %v437 = vunpack.c.h.b16 %v351
        %v438 = vunpack.c.l.b16 %v352
        %v439 = vunpack.c.h.b16 %v352
        %v440 = vunpack.c.l.b16 %v353
        %v441 = vunpack.c.h.b16 %v353
        %v442 = vunpack.c.l.b16 %v354
        %v443 = vunpack.c.h.b16 %v354
        %v444 = vunpack.c.l.b16 %v355
        %v445 = vunpack.c.h.b16 %v355
        %v446 = vunpack.c.l.b16 %v356
        %v447 = vunpack.c.h.b16 %v356
        %v448 = vunpack.c.l.b16 %v357
        %v449 = vunpack.c.h.b16 %v357
        %v450 = vunpack.c.l.b16 %v358
        %v451 = vunpack.c.h.b16 %v358
        %v452 = vunpack.c.l.b16 %v359
        %v453 = vunpack.c.h.b16 %v359
        %v454 = vunpack.c.l.b16 %v360
        %v455 = vunpack.c.h.b16 %v360
        %v456 = vunpack.c.l.b16 %v361
        %v457 = vunpack.c.h.b16 %v361
        %v458 = vpack.c.b16 %v396, %v394
        %v459 = vpack.c.b16 %v397, %v395
        %v460 = vpack.c.b16 %v400, %v398
        %v461 = vpack.c.b16 %v401, %v399
        %v462 = vpack.c.b16 %v404, %v402
        %v463 = vpack.c.b16 %v405, %v403
        %v464 = vpack.c.b16 %v408, %v406
        %v465 = vpack.c.b16 %v409, %v407
        %v466 = vpack.c.b16 %v412, %v410
        %v467 = vpack.c.b16 %v413, %v411
        %v468 = vpack.c.b16 %v416, %v414
        %v469 = vpack.c.b16 %v417, %v415
        %v470 = vpack.c.b16 %v420, %v418
        %v471 = vpack.c.b16 %v421, %v419
        %v472 = vpack.c.b16 %v424, %v422
        %v473 = vpack.c.b16 %v425, %v423
        %v474 = vpack.c.b16 %v428, %v426
        %v475 = vpack.c.b16 %v429, %v427
        %v476 = vpack.c.b16 %v432, %v430
        %v477 = vpack.c.b16 %v433, %v431
        %v478 = vpack.c.b16 %v436, %v434
        %v479 = vpack.c.b16 %v437, %v435
        %v480 = vpack.c.b16 %v440, %v438
        %v481 = vpack.c.b16 %v441, %v439
        %v482 = vpack.c.b16 %v444, %v442
        %v483 = vpack.c.b16 %v445, %v443
        %v484 = vpack.c.b16 %v448, %v446
        %v485 = vpack.c.b16 %v449, %v447
        %v486 = vpack.c.b16 %v452, %v450
        %v487 = vpack.c.b16 %v453, %v451
        %v488 = vpack.c.b16 %v456, %v454
        %v489 = vpack.c.b16 %v457, %v455
        %v554 = vunpack.c.l.b16 %v266
        %v555 = vunpack.c.l.b16 %v267
        %v556 = vunpack.c.l.b16 %v268
        %v557 = vunpack.c.l.b16 %v269
        %v558 = vunpack.c.l.b16 %v270
        %v559 = vunpack.c.l.b16 %v271
        %v560 = vunpack.c.l.b16 %v272
        %v561 = vunpack.c.l.b16 %v273
        %v562 = vunpack.c.l.b16 %v274
        %v563 = vunpack.c.l.b16 %v275
        %v564 = vunpack.c.l.b16 %v276
        %v565 = vunpack.c.l.b16 %v277
        %v566 = vunpack.c.l.b16 %v278
        %v567 = vunpack.c.l.b16 %v279
        %v568 = vunpack.c.l.b16 %v280
        %v569 = vunpack.c.l.b16 %v281
        %v570 = vunpack.c.l.b16 %v282
        %v571 = vunpack.c.l.b16 %v283
        %v572 = vunpack.c.l.b16 %v284
        %v573 = vunpack.c.l.b16 %v285
        %v574 = vunpack.c.l.b16 %v286
        %v575 = vunpack.c.l.b16 %v287
        %v576 = vunpack.c.l.b16 %v288
        %v577 = vunpack.c.l.b16 %v289
        %v578 = vunpack.c.l.b16 %v290
        %v579 = vunpack.c.l.b16 %v291
        %v580 = vunpack.c.l.b16 %v292
        %v581 = vunpack.c.l.b16 %v293
        %v582 = vunpack.c.l.b16 %v294
        %v583 = vunpack.c.l.b16 %v295
        %v584 = vunpack.c.l.b16 %v296
        %v585 = vunpack.c.l.b16 %v297
        %v586 = vpack.c.b16 %v555, %v554
        %v587 = vpack.c.b16 %v557, %v556
        %v588 = vpack.c.b16 %v559, %v558
        %v589 = vpack.c.b16 %v561, %v560
        %v590 = vpack.c.b16 %v563, %v562
        %v591 = vpack.c.b16 %v565, %v564
        %v592 = vpack.c.b16 %v567, %v566
        %v593 = vpack.c.b16 %v569, %v568
        %v594 = vpack.c.b16 %v571, %v570
        %v595 = vpack.c.b16 %v573, %v572
        %v596 = vpack.c.b16 %v575, %v574
        %v597 = vpack.c.b16 %v577, %v576
        %v598 = vpack.c.b16 %v579, %v578
        %v599 = vpack.c.b16 %v581, %v580
        %v600 = vpack.c.b16 %v583, %v582
        %v601 = vpack.c.b16 %v585, %v584
        %618 = vmatprep.subr.bf16.mxu0 0
        %619 = vmatpush1.bf16.msra.mxu0 %v593
        %620 = vmatprep.subr.bf16.mxu0 0
        %621 = vmatpush1.bf16.msra.mxu0 %v592
        %622 = vmatprep.subr.bf16.mxu0 0
        %623 = vmatpush1.bf16.msra.mxu0 %v591
        %624 = vmatprep.subr.bf16.mxu0 0
        %625 = vmatpush1.bf16.msra.mxu0 %v590
        %626 = vmatprep.subr.bf16.mxu0 0
        %627 = vmatpush1.bf16.msra.mxu0 %v589
        %628 = vmatprep.subr.bf16.mxu0 0
        %629 = vmatpush1.bf16.msra.mxu0 %v588
        %630 = vmatprep.subr.bf16.mxu0 0
        %631 = vmatpush1.bf16.msra.mxu0 %v587
        %632 = vmatprep.subr.bf16.mxu0 0
        %633 = vmatpush1.bf16.msra.mxu0 %v586
        %634 = vmatprep.subr.bf16.mxu0 0
        %635 = vmatpush2.bf16.msra.mxu0 %v601
        %636 = vmatprep.subr.bf16.mxu0 0
        %637 = vmatpush2.bf16.msra.mxu0 %v600
        %638 = vmatprep.subr.bf16.mxu0 0
        %639 = vmatpush2.bf16.msra.mxu0 %v599
        %640 = vmatprep.subr.bf16.mxu0 0
        %641 = vmatpush2.bf16.msra.mxu0 %v598
        %642 = vmatprep.subr.bf16.mxu0 0
        %643 = vmatpush2.bf16.msra.mxu0 %v597
        %644 = vmatprep.subr.bf16.mxu0 0
        %645 = vmatpush2.bf16.msra.mxu0 %v596
        %646 = vmatprep.subr.bf16.mxu0 0
        %647 = vmatpush2.bf16.msra.mxu0 %v595
        %648 = vmatprep.subr.bf16.mxu0 0
        %649 = vmatpush2.bf16.msra.mxu0 %v594
        %650 = vmatprep.mubr.bf16.mxu0 %v459
        %651 = vmatmul.mubr.bf16.gmra.mxu0 %v458
        %v652 = vpop.f32.mrf.mxu0
        %v653 = vadd.f32 0.0, %v652
        %v654 = vpop.f32.mrf.mxu0
        %v655 = vpop.f32.mrf.mxu0
        %v656 = vadd.f32 0.0, %v655
        %v657 = vpop.f32.mrf.mxu0
        %658 = vmatprep.mubr.bf16.mxu0 %v461
        %659 = vmatmul.mubr.bf16.gmra.mxu0 %v460
        %v660 = vpop.f32.mrf.mxu0
        %v661 = vadd.f32 0.0, %v660
        %v662 = vpop.f32.mrf.mxu0
        %v663 = vpop.f32.mrf.mxu0
        %v664 = vadd.f32 0.0, %v663
        %v665 = vpop.f32.mrf.mxu0
        %666 = vmatprep.mubr.bf16.mxu0 %v463
        %667 = vmatmul.mubr.bf16.gmra.mxu0 %v462
        %v668 = vpop.f32.mrf.mxu0
        %v669 = vadd.f32 0.0, %v668
        %v670 = vpop.f32.mrf.mxu0
        %v671 = vpop.f32.mrf.mxu0
        %v672 = vadd.f32 0.0, %v671
        %v673 = vpop.f32.mrf.mxu0
        %674 = vmatprep.mubr.bf16.mxu0 %v465
        %675 = vmatmul.mubr.bf16.gmra.mxu0 %v464
        %v676 = vpop.f32.mrf.mxu0
        %v677 = vadd.f32 0.0, %v676
        %v678 = vpop.f32.mrf.mxu0
        %v679 = vpop.f32.mrf.mxu0
        %v680 = vadd.f32 0.0, %v679
        %v681 = vpop.f32.mrf.mxu0
        %682 = vmatprep.mubr.bf16.mxu0 %v467
        %683 = vmatmul.mubr.bf16.gmra.mxu0 %v466
        %v684 = vpop.f32.mrf.mxu0
        %v685 = vadd.f32 0.0, %v684
        %v686 = vpop.f32.mrf.mxu0
        %v687 = vpop.f32.mrf.mxu0
        %v688 = vadd.f32 0.0, %v687
        %v689 = vpop.f32.mrf.mxu0
        %690 = vmatprep.mubr.bf16.mxu0 %v469
        %691 = vmatmul.mubr.bf16.gmra.mxu0 %v468
        %v692 = vpop.f32.mrf.mxu0
        %v693 = vadd.f32 0.0, %v692
        %v694 = vpop.f32.mrf.mxu0
        %v695 = vpop.f32.mrf.mxu0
        %v696 = vadd.f32 0.0, %v695
        %v697 = vpop.f32.mrf.mxu0
        %698 = vmatprep.mubr.bf16.mxu0 %v471
        %699 = vmatmul.mubr.bf16.gmra.mxu0 %v470
        %v700 = vpop.f32.mrf.mxu0
        %v701 = vadd.f32 0.0, %v700
        %v702 = vpop.f32.mrf.mxu0
        %v703 = vpop.f32.mrf.mxu0
        %v704 = vadd.f32 0.0, %v703
        %v705 = vpop.f32.mrf.mxu0
        %706 = vmatprep.mubr.bf16.mxu0 %v473
        %707 = vmatmul.mubr.bf16.gmra.mxu0 %v472
        %v708 = vpop.f32.mrf.mxu0
        %v709 = vadd.f32 0.0, %v708
        %v710 = vpop.f32.mrf.mxu0
        %v711 = vpop.f32.mrf.mxu0
        %v712 = vadd.f32 0.0, %v711
        %v713 = vpop.f32.mrf.mxu0
        %714 = vmatprep.mubr.bf16.mxu0 %v475
        %715 = vmatmul.mubr.bf16.gmra.mxu0 %v474
        %v716 = vpop.f32.mrf.mxu0
        %v717 = vadd.f32 0.0, %v716
        %v718 = vpop.f32.mrf.mxu0
        %v719 = vpop.f32.mrf.mxu0
        %v720 = vadd.f32 0.0, %v719
        %v721 = vpop.f32.mrf.mxu0
        %722 = vmatprep.mubr.bf16.mxu0 %v477
        %723 = vmatmul.mubr.bf16.gmra.mxu0 %v476
        %v724 = vpop.f32.mrf.mxu0
        %v725 = vadd.f32 0.0, %v724
        %v726 = vpop.f32.mrf.mxu0
        %v727 = vpop.f32.mrf.mxu0
        %v728 = vadd.f32 0.0, %v727
        %v729 = vpop.f32.mrf.mxu0
        %730 = vmatprep.mubr.bf16.mxu0 %v479
        %731 = vmatmul.mubr.bf16.gmra.mxu0 %v478
        %v732 = vpop.f32.mrf.mxu0
        %v733 = vadd.f32 0.0, %v732
        %v734 = vpop.f32.mrf.mxu0
        %v735 = vpop.f32.mrf.mxu0
        %v736 = vadd.f32 0.0, %v735
        %v737 = vpop.f32.mrf.mxu0
        %738 = vmatprep.mubr.bf16.mxu0 %v481
        %739 = vmatmul.mubr.bf16.gmra.mxu0 %v480
        %v740 = vpop.f32.mrf.mxu0
        %v741 = vadd.f32 0.0, %v740
        %v742 = vpop.f32.mrf.mxu0
        %v743 = vpop.f32.mrf.mxu0
        %v744 = vadd.f32 0.0, %v743
        %v745 = vpop.f32.mrf.mxu0
        %746 = vmatprep.mubr.bf16.mxu0 %v483
        %747 = vmatmul.mubr.bf16.gmra.mxu0 %v482
        %v748 = vpop.f32.mrf.mxu0
        %v749 = vadd.f32 0.0, %v748
        %v750 = vpop.f32.mrf.mxu0
        %v751 = vpop.f32.mrf.mxu0
        %v752 = vadd.f32 0.0, %v751
        %v753 = vpop.f32.mrf.mxu0
        %754 = vmatprep.mubr.bf16.mxu0 %v485
        %755 = vmatmul.mubr.bf16.gmra.mxu0 %v484
        %v756 = vpop.f32.mrf.mxu0
        %v757 = vadd.f32 0.0, %v756
        %v758 = vpop.f32.mrf.mxu0
        %v759 = vpop.f32.mrf.mxu0
        %v760 = vadd.f32 0.0, %v759
        %v761 = vpop.f32.mrf.mxu0
        %762 = vmatprep.mubr.bf16.mxu0 %v487
        %763 = vmatmul.mubr.bf16.gmra.mxu0 %v486
        %v764 = vpop.f32.mrf.mxu0
        %v765 = vadd.f32 0.0, %v764
        %v766 = vpop.f32.mrf.mxu0
        %v767 = vpop.f32.mrf.mxu0
        %v768 = vadd.f32 0.0, %v767
        %v769 = vpop.f32.mrf.mxu0
        %770 = vmatprep.mubr.bf16.mxu0 %v489
        %771 = vmatmul.mubr.bf16.gmra.mxu0 %v488
        %v772 = vpop.f32.mrf.mxu0
        %v773 = vadd.f32 0.0, %v772
        %v774 = vpop.f32.mrf.mxu0
        %v775 = vpop.f32.mrf.mxu0
        %v776 = vadd.f32 0.0, %v775
        %v777 = vpop.f32.mrf.mxu0
        %778 = vdwg.mxu0
        %v779 = vadd.f32 %v298, %v653
        %v780 = vadd.f32 %v299, %v656
        %v781 = vadd.f32 %v300, %v661
        %v782 = vadd.f32 %v301, %v664
        %v783 = vadd.f32 %v302, %v669
        %v784 = vadd.f32 %v303, %v672
        %v785 = vadd.f32 %v304, %v677
        %v786 = vadd.f32 %v305, %v680
        %v787 = vadd.f32 %v306, %v685
        %v788 = vadd.f32 %v307, %v688
        %v789 = vadd.f32 %v308, %v693
        %v790 = vadd.f32 %v309, %v696
        %v791 = vadd.f32 %v310, %v701
        %v792 = vadd.f32 %v311, %v704
        %v793 = vadd.f32 %v312, %v709
        %v794 = vadd.f32 %v313, %v712
        %v795 = vadd.f32 %v314, %v717
        %v796 = vadd.f32 %v315, %v720
        %v797 = vadd.f32 %v316, %v725
        %v798 = vadd.f32 %v317, %v728
        %v799 = vadd.f32 %v318, %v733
        %v800 = vadd.f32 %v319, %v736
        %v801 = vadd.f32 %v320, %v741
        %v802 = vadd.f32 %v321, %v744
        %v803 = vadd.f32 %v322, %v749
        %v804 = vadd.f32 %v323, %v752
        %v805 = vadd.f32 %v324, %v757
        %v806 = vadd.f32 %v325, %v760
        %v807 = vadd.f32 %v326, %v765
        %v808 = vadd.f32 %v327, %v768
        %v809 = vadd.f32 %v328, %v773
        %v810 = vadd.f32 %v329, %v776
        %811 = vst [vmem:[#allocation2] sm:$0xff] %v779
        %812 = vst [vmem:[#allocation2 + $0x8] sm:$0xff] %v780
        %813 = vst [vmem:[#allocation2 + $0x10] sm:$0xff] %v781
        %814 = vst [vmem:[#allocation2 + $0x18] sm:$0xff] %v782
        %815 = vst [vmem:[#allocation2 + $0x20] sm:$0xff] %v783
        %816 = vst [vmem:[#allocation2 + $0x28] sm:$0xff] %v784
        %817 = vst [vmem:[#allocation2 + $0x30] sm:$0xff] %v785
        %818 = vst [vmem:[#allocation2 + $0x38] sm:$0xff] %v786
        %819 = vst [vmem:[#allocation2 + $0x40] sm:$0xff] %v787
        %820 = vst [vmem:[#allocation2 + $0x48] sm:$0xff] %v788
        %821 = vst [vmem:[#allocation2 + $0x50] sm:$0xff] %v789
        %822 = vst [vmem:[#allocation2 + $0x58] sm:$0xff] %v790
        %823 = vst [vmem:[#allocation2 + $0x60] sm:$0xff] %v791
        %824 = vst [vmem:[#allocation2 + $0x68] sm:$0xff] %v792
        %825 = vst [vmem:[#allocation2 + $0x70] sm:$0xff] %v793
        %826 = vst [vmem:[#allocation2 + $0x78] sm:$0xff] %v794
        %827 = vst [vmem:[#allocation2 + $0x80] sm:$0xff] %v795
        %828 = vst [vmem:[#allocation2 + $0x88] sm:$0xff] %v796
        %829 = vst [vmem:[#allocation2 + $0x90] sm:$0xff] %v797
        %830 = vst [vmem:[#allocation2 + $0x98] sm:$0xff] %v798
        %831 = vst [vmem:[#allocation2 + $0xa0] sm:$0xff] %v799
        %832 = vst [vmem:[#allocation2 + $0xa8] sm:$0xff] %v800
        %833 = vst [vmem:[#allocation2 + $0xb0] sm:$0xff] %v801
        %834 = vst [vmem:[#allocation2 + $0xb8] sm:$0xff] %v802
        %835 = vst [vmem:[#allocation2 + $0xc0] sm:$0xff] %v803
        %836 = vst [vmem:[#allocation2 + $0xc8] sm:$0xff] %v804
        %837 = vst [vmem:[#allocation2 + $0xd0] sm:$0xff] %v805
        %838 = vst [vmem:[#allocation2 + $0xd8] sm:$0xff] %v806
        %839 = vst [vmem:[#allocation2 + $0xe0] sm:$0xff] %v807
        %840 = vst [vmem:[#allocation2 + $0xe8] sm:$0xff] %v808
        %841 = vst [vmem:[#allocation2 + $0xf0] sm:$0xff] %v809
        %842 = vst [vmem:[#allocation2 + $0xf8] sm:$0xff] %v810
        %p843 = scmp.eq.s32.totalorder %s26, 1
        // Predicated region
        $region45: #{tpu_custom_call.1} parent=31 // pred_check
          %p844 = pneg %p843
        $region46: #{tpu_custom_call.1} parent=31 // pred_check_branch
          %846 = sbr.rel (%p844) target = $region48
        $region47: #{tpu_custom_call.1} parent=31 // pred_region
          %v847 = vld [vmem:[#allocation2] sm:$0xff]
          %v848 = vld [vmem:[#allocation2 + $0x8] sm:$0xff]
          %v849 = vld [vmem:[#allocation2 + $0x10] sm:$0xff]
          %v850 = vld [vmem:[#allocation2 + $0x18] sm:$0xff]
          %v851 = vld [vmem:[#allocation2 + $0x20] sm:$0xff]
          %v852 = vld [vmem:[#allocation2 + $0x28] sm:$0xff]
          %v853 = vld [vmem:[#allocation2 + $0x30] sm:$0xff]
          %v854 = vld [vmem:[#allocation2 + $0x38] sm:$0xff]
          %v855 = vld [vmem:[#allocation2 + $0x40] sm:$0xff]
          %v856 = vld [vmem:[#allocation2 + $0x48] sm:$0xff]
          %v857 = vld [vmem:[#allocation2 + $0x50] sm:$0xff]
          %v858 = vld [vmem:[#allocation2 + $0x58] sm:$0xff]
          %v859 = vld [vmem:[#allocation2 + $0x60] sm:$0xff]
          %v860 = vld [vmem:[#allocation2 + $0x68] sm:$0xff]
          %v861 = vld [vmem:[#allocation2 + $0x70] sm:$0xff]
          %v862 = vld [vmem:[#allocation2 + $0x78] sm:$0xff]
          %v863 = vld [vmem:[#allocation2 + $0x80] sm:$0xff]
          %v864 = vld [vmem:[#allocation2 + $0x88] sm:$0xff]
          %v865 = vld [vmem:[#allocation2 + $0x90] sm:$0xff]
          %v866 = vld [vmem:[#allocation2 + $0x98] sm:$0xff]
          %v867 = vld [vmem:[#allocation2 + $0xa0] sm:$0xff]
          %v868 = vld [vmem:[#allocation2 + $0xa8] sm:$0xff]
          %v869 = vld [vmem:[#allocation2 + $0xb0] sm:$0xff]
          %v870 = vld [vmem:[#allocation2 + $0xb8] sm:$0xff]
          %v871 = vld [vmem:[#allocation2 + $0xc0] sm:$0xff]
          %v872 = vld [vmem:[#allocation2 + $0xc8] sm:$0xff]
          %v873 = vld [vmem:[#allocation2 + $0xd0] sm:$0xff]
          %v874 = vld [vmem:[#allocation2 + $0xd8] sm:$0xff]
          %v875 = vld [vmem:[#allocation2 + $0xe0] sm:$0xff]
          %v876 = vld [vmem:[#allocation2 + $0xe8] sm:$0xff]
          %v877 = vld [vmem:[#allocation2 + $0xf0] sm:$0xff]
          %v878 = vld [vmem:[#allocation2 + $0xf8] sm:$0xff]
          %v879 = vld [vmem:[%s2] sm:$0x1]
          %v881 = vlaneseq
          %v882 = vshrl.u32 %v881, 7
          %v883 = vsub.s32 0, %v882
          %v884 = vrot.slane %v879, %v883
          %v886 = vadd.f32 %v847, %v884
          %v887 = vadd.f32 %v848, %v884
          %v888 = vadd.f32 %v849, %v884
          %v889 = vadd.f32 %v850, %v884
          %v890 = vadd.f32 %v851, %v884
          %v891 = vadd.f32 %v852, %v884
          %v892 = vadd.f32 %v853, %v884
          %v893 = vadd.f32 %v854, %v884
          %v894 = vadd.f32 %v855, %v884
          %v895 = vadd.f32 %v856, %v884
          %v896 = vadd.f32 %v857, %v884
          %v897 = vadd.f32 %v858, %v884
          %v898 = vadd.f32 %v859, %v884
          %v899 = vadd.f32 %v860, %v884
          %v900 = vadd.f32 %v861, %v884
          %v901 = vadd.f32 %v862, %v884
          %v902 = vadd.f32 %v863, %v884
          %v903 = vadd.f32 %v864, %v884
          %v904 = vadd.f32 %v865, %v884
          %v905 = vadd.f32 %v866, %v884
          %v906 = vadd.f32 %v867, %v884
          %v907 = vadd.f32 %v868, %v884
          %v908 = vadd.f32 %v869, %v884
          %v909 = vadd.f32 %v870, %v884
          %v910 = vadd.f32 %v871, %v884
          %v911 = vadd.f32 %v872, %v884
          %v912 = vadd.f32 %v873, %v884
          %v913 = vadd.f32 %v874, %v884
          %v914 = vadd.f32 %v875, %v884
          %v915 = vadd.f32 %v876, %v884
          %v916 = vadd.f32 %v877, %v884
          %v917 = vadd.f32 %v878, %v884
          %v918 = vmax.f32 %v886, 0.0
          %v919 = vmax.f32 %v887, 0.0
          %v920 = vmax.f32 %v888, 0.0
          %v921 = vmax.f32 %v889, 0.0
          %v922 = vmax.f32 %v890, 0.0
          %v923 = vmax.f32 %v891, 0.0
          %v924 = vmax.f32 %v892, 0.0
          %v925 = vmax.f32 %v893, 0.0
          %v926 = vmax.f32 %v894, 0.0
          %v927 = vmax.f32 %v895, 0.0
          %v928 = vmax.f32 %v896, 0.0
          %v929 = vmax.f32 %v897, 0.0
          %v930 = vmax.f32 %v898, 0.0
          %v931 = vmax.f32 %v899, 0.0
          %v932 = vmax.f32 %v900, 0.0
          %v933 = vmax.f32 %v901, 0.0
          %v934 = vmax.f32 %v902, 0.0
          %v935 = vmax.f32 %v903, 0.0
          %v936 = vmax.f32 %v904, 0.0
          %v937 = vmax.f32 %v905, 0.0
          %v938 = vmax.f32 %v906, 0.0
          %v939 = vmax.f32 %v907, 0.0
          %v940 = vmax.f32 %v908, 0.0
          %v941 = vmax.f32 %v909, 0.0
          %v942 = vmax.f32 %v910, 0.0
          %v943 = vmax.f32 %v911, 0.0
          %v944 = vmax.f32 %v912, 0.0
          %v945 = vmax.f32 %v913, 0.0
          %v946 = vmax.f32 %v914, 0.0
          %v947 = vmax.f32 %v915, 0.0
          %v948 = vmax.f32 %v916, 0.0
          %v949 = vmax.f32 %v917, 0.0
          %v950 = vpack.c.bf16 %v919, %v918
          %v951 = vpack.c.bf16 %v921, %v920
          %v952 = vpack.c.bf16 %v923, %v922
          %v953 = vpack.c.bf16 %v925, %v924
          %v954 = vpack.c.bf16 %v927, %v926
          %v955 = vpack.c.bf16 %v929, %v928
          %v956 = vpack.c.bf16 %v931, %v930
          %v957 = vpack.c.bf16 %v933, %v932
          %v958 = vpack.c.bf16 %v935, %v934
          %v959 = vpack.c.bf16 %v937, %v936
          %v960 = vpack.c.bf16 %v939, %v938
          %v961 = vpack.c.bf16 %v941, %v940
          %v962 = vpack.c.bf16 %v943, %v942
          %v963 = vpack.c.bf16 %v945, %v944
          %v964 = vpack.c.bf16 %v947, %v946
          %v965 = vpack.c.bf16 %v949, %v948
          %v982 = vunpack.c.l.b16 %v950
          %v983 = vunpack.c.h.b16 %v950
          %v984 = vunpack.c.l.b16 %v951
          %v985 = vunpack.c.h.b16 %v951
          %v986 = vunpack.c.l.b16 %v952
          %v987 = vunpack.c.h.b16 %v952
          %v988 = vunpack.c.l.b16 %v953
          %v989 = vunpack.c.h.b16 %v953
          %v990 = vunpack.c.l.b16 %v954
          %v991 = vunpack.c.h.b16 %v954
          %v992 = vunpack.c.l.b16 %v955
          %v993 = vunpack.c.h.b16 %v955
          %v994 = vunpack.c.l.b16 %v956
          %v995 = vunpack.c.h.b16 %v956
          %v996 = vunpack.c.l.b16 %v957
          %v997 = vunpack.c.h.b16 %v957
          %v998 = vunpack.c.l.b16 %v958
          %v999 = vunpack.c.h.b16 %v958
          %v1000 = vunpack.c.l.b16 %v959
          %v1001 = vunpack.c.h.b16 %v959
          %v1002 = vunpack.c.l.b16 %v960
          %v1003 = vunpack.c.h.b16 %v960
          %v1004 = vunpack.c.l.b16 %v961
          %v1005 = vunpack.c.h.b16 %v961
          %v1006 = vunpack.c.l.b16 %v962
          %v1007 = vunpack.c.h.b16 %v962
          %v1008 = vunpack.c.l.b16 %v963
          %v1009 = vunpack.c.h.b16 %v963
          %v1010 = vunpack.c.l.b16 %v964
          %v1011 = vunpack.c.h.b16 %v964
          %v1012 = vunpack.c.l.b16 %v965
          %v1013 = vunpack.c.h.b16 %v965
          %v1014 = vpack.c.b16 %v982, %v982
          %v1015 = vpack.c.b16 %v983, %v983
          %v1016 = vpack.c.b16 %v984, %v984
          %v1017 = vpack.c.b16 %v985, %v985
          %v1018 = vpack.c.b16 %v986, %v986
          %v1019 = vpack.c.b16 %v987, %v987
          %v1020 = vpack.c.b16 %v988, %v988
          %v1021 = vpack.c.b16 %v989, %v989
          %v1022 = vpack.c.b16 %v990, %v990
          %v1023 = vpack.c.b16 %v991, %v991
          %v1024 = vpack.c.b16 %v992, %v992
          %v1025 = vpack.c.b16 %v993, %v993
          %v1026 = vpack.c.b16 %v994, %v994
          %v1027 = vpack.c.b16 %v995, %v995
          %v1028 = vpack.c.b16 %v996, %v996
          %v1029 = vpack.c.b16 %v997, %v997
          %v1030 = vpack.c.b16 %v998, %v998
          %v1031 = vpack.c.b16 %v999, %v999
          %v1032 = vpack.c.b16 %v1000, %v1000
          %v1033 = vpack.c.b16 %v1001, %v1001
          %v1034 = vpack.c.b16 %v1002, %v1002
          %v1035 = vpack.c.b16 %v1003, %v1003
          %v1036 = vpack.c.b16 %v1004, %v1004
          %v1037 = vpack.c.b16 %v1005, %v1005
          %v1038 = vpack.c.b16 %v1006, %v1006
          %v1039 = vpack.c.b16 %v1007, %v1007
          %v1040 = vpack.c.b16 %v1008, %v1008
          %v1041 = vpack.c.b16 %v1009, %v1009
          %v1042 = vpack.c.b16 %v1010, %v1010
          %v1043 = vpack.c.b16 %v1011, %v1011
          %v1044 = vpack.c.b16 %v1012, %v1012
          %v1045 = vpack.c.b16 %v1013, %v1013
          %1078 = vst [vmem:[%s220] sm:$0xf] %v1014
          %1079 = vst [vmem:[%s220 + $0x4] sm:$0xf] %v1015
          %1080 = vst [vmem:[%s220 + $0x8] sm:$0xf] %v1016
          %1081 = vst [vmem:[%s220 + $0xc] sm:$0xf] %v1017
          %1082 = vst [vmem:[%s220 + $0x10] sm:$0xf] %v1018
          %1083 = vst [vmem:[%s220 + $0x14] sm:$0xf] %v1019
          %1084 = vst [vmem:[%s220 + $0x18] sm:$0xf] %v1020
          %1085 = vst [vmem:[%s220 + $0x1c] sm:$0xf] %v1021
          %1086 = vst [vmem:[%s220 + $0x20] sm:$0xf] %v1022
          %1087 = vst [vmem:[%s220 + $0x24] sm:$0xf] %v1023
          %1088 = vst [vmem:[%s220 + $0x28] sm:$0xf] %v1024
          %1089 = vst [vmem:[%s220 + $0x2c] sm:$0xf] %v1025
          %1090 = vst [vmem:[%s220 + $0x30] sm:$0xf] %v1026
          %1091 = vst [vmem:[%s220 + $0x34] sm:$0xf] %v1027
          %1092 = vst [vmem:[%s220 + $0x38] sm:$0xf] %v1028
          %1093 = vst [vmem:[%s220 + $0x3c] sm:$0xf] %v1029
          %1094 = vst [vmem:[%s220 + $0x40] sm:$0xf] %v1030
          %1095 = vst [vmem:[%s220 + $0x44] sm:$0xf] %v1031
          %1096 = vst [vmem:[%s220 + $0x48] sm:$0xf] %v1032
          %1097 = vst [vmem:[%s220 + $0x4c] sm:$0xf] %v1033
          %1098 = vst [vmem:[%s220 + $0x50] sm:$0xf] %v1034
          %1099 = vst [vmem:[%s220 + $0x54] sm:$0xf] %v1035
          %1100 = vst [vmem:[%s220 + $0x58] sm:$0xf] %v1036
          %1101 = vst [vmem:[%s220 + $0x5c] sm:$0xf] %v1037
          %1102 = vst [vmem:[%s220 + $0x60] sm:$0xf] %v1038
          %1103 = vst [vmem:[%s220 + $0x64] sm:$0xf] %v1039
          %1104 = vst [vmem:[%s220 + $0x68] sm:$0xf] %v1040
          %1105 = vst [vmem:[%s220 + $0x6c] sm:$0xf] %v1041
          %1106 = vst [vmem:[%s220 + $0x70] sm:$0xf] %v1042
          %1107 = vst [vmem:[%s220 + $0x74] sm:$0xf] %v1043
          %1108 = vst [vmem:[%s220 + $0x78] sm:$0xf] %v1044
          %1109 = vst [vmem:[%s220 + $0x7c] sm:$0xf] %v1045
        $region48: #{tpu_custom_call.1} parent=31 // pred_fallthru
          _
        %s1110 = sand.u32 %s111, 1
        %s1111 = scalar_lea.sflag [#allocation5], %s1110
        %s1112 = sand.u32 %s111, 1
        %s1113 = smul.addr %s1112, 128
        %s1114 = scalar_lea.vmem [#allocation8], %s1113
        // Predicated region
        $region49: #{tpu_custom_call.1} parent=31 // pred_check
          %p1115 = pneg %p121
        $region50: #{tpu_custom_call.1} parent=31 // pred_check_branch
          %1117 = sbr.rel (%p1115) target = $region52
        $region51: #{tpu_custom_call.1} parent=31 // pred_region
          %s1118 = smul.u32 32, %s25
          %s1120 = ssub.s32 2048, 2048
          %1121 = vsyncadd %s1111, %s1120
          %s1122 = smul.addr %s1118, 64
          %s1123 = scalar_lea.hbm %s3, %s1122
          %s1124 = sshll.u32 %s1114, 4
          %s1125 = int_to_ptr.vmem [resolvable:$true] %s1124
          %1130 = dma.vmem_to_hbm [thread:$0]  %s1125, 2048, %s1123, %s1111, 64, 64, 4
        $region52: #{tpu_custom_call.1} parent=31 // pred_fallthru
          _
      $region32: #{tpu_custom_call.1} parent=5 // pred_fallthru
        _
      %p1131 = scmp.le.s32.totalorder 2, %s16
      // Predicated region
      $region53: #{tpu_custom_call.1} parent=5 // pred_check
        %p1132 = pneg %p1131
      $region54: #{tpu_custom_call.1} parent=5 // pred_check_branch
        %1134 = sbr.rel (%p1132) target = $region56
      $region55: #{tpu_custom_call.1} parent=5 // pred_region
        %s1135 = ssub.s32 %s16, 2
        // Predicated region
        $region57: #{tpu_custom_call.1} parent=55 // pred_check
          %p1136 = pneg %p127
        $region58: #{tpu_custom_call.1} parent=55 // pred_check_branch
          %1138 = sbr.rel (%p1136) target = $region60
        $region59: #{tpu_custom_call.1} parent=55 // pred_region
          %s1139 = sand.u32 %s112, 1
          %s1140 = scalar_lea.sflag [#allocation5], %s1139
          %s1141 = sand.u32 %s112, 1
          %s1142 = smul.addr %s1141, 128
          %s1143 = scalar_lea.vmem [#allocation8], %s1142
          %1144 = dma.done %s1140, 2048
        $region60: #{tpu_custom_call.1} parent=55 // pred_fallthru
          _
      $region56: #{tpu_custom_call.1} parent=5 // pred_fallthru
        _
    $region6: #{tpu_custom_call.1} parent=1 // loop_footer
      %s20 = sadd.s32 1, %s16
    $region7: #{tpu_custom_call.1} parent=1 // loop_footer_branch
      %15 = sbr.rel target = $region3
    $region8: #{tpu_custom_call.1} parent=1 // loop_exit
      _
    %1145 = vsyncpa [#allocation4], 1
    %s1146 = scalar_lea.sflag [#allocation4], 1
    %1147 = vsyncpa %s1146, 1
    %1148 = vsyncpa [#allocation7], 1
    %1149 = vsyncpa [#allocation5], 1
    %s1150 = scalar_lea.sflag [#allocation5], 1
    %1151 = vsyncpa %s1150, 1

</llo_original>
